<compile_context>
chip_gen: v5e
topology: v5e:2x2
jax: 0.10.0
libtpu: 0.0.40
codegen_flags: <defaults>
</compile_context>

<pallas_src>
import functools

import jax
import jax.numpy as jnp
from jax import lax
from jax.experimental import pallas as pl
from jax.experimental.pallas import tpu as pltpu


_EPS = 1e-5
_VMEM_LIMIT_BYTES = 48 * 1024 * 1024   # safe on v5e/v6e/v7x, >> scoped default


def _conv_stats_kernel(w_ref, p_ref, conv_ref, stats_ref):
    """Pass 1: conv-as-matmul + per-(n, c) sum / sum-of-squares accumulation.

    w_ref    : (Cout, K)        bf16 weight (constant block across the grid)
    p_ref    : (1, K, T_HW)     bf16 im2col patch tile (lane dim = spatial)
    conv_ref : (1, Cout, T_HW)  f32 conv tile (lane-dense, NCHW-flat)
    stats_ref: (1, Cout, 2)     f32 [sum, sumsq], resident across the HW axis
    """
    t = pl.program_id(1)

    # MXU: bf16 x bf16 -> f32 accumulate.
    conv = jnp.dot(w_ref[...], p_ref[0], preferred_element_type=jnp.float32)
    conv_ref[0] = conv.astype(conv_ref.dtype)

    # One-pass stats: per-channel sum and sum of squares (lane reduction).
    s = jnp.sum(conv, axis=1, keepdims=True)           # [Cout, 1]
    ss = jnp.sum(conv * conv, axis=1, keepdims=True)   # [Cout, 1]
    part = jnp.concatenate([s, ss], axis=1)            # [Cout, 2]

    @pl.when(t == 0)
    def _():
        stats_ref[0] = part

    @pl.when(t != 0)
    def _():
        stats_ref[0] += part


def _norm_lrelu_kernel(inv_hw, stats_ref, conv_ref, o_ref):
    """Pass 2: finalize InstanceNorm (biased var) + LeakyReLU(0.2).

    stats_ref: (1, Cout, 2)     f32 [sum, sumsq] over the full Ho*Wo
    conv_ref : (1, Cout, T_HW)  f32 conv tile
    o_ref    : (1, Cout, T_HW)  f32 output tile
    """
    stats = stats_ref[0]                                # [Cout, 2]
    mean = stats[:, 0:1] * inv_hw                       # [Cout, 1]
    var = stats[:, 1:2] * inv_hw - mean * mean          # E[x^2] - mean^2
    var = jnp.maximum(var, 0.0)
    scale = lax.rsqrt(var + _EPS)                       # [Cout, 1]  (EUP)

    x = conv_ref[0]                                     # [Cout, T_HW]
    y = (x - mean) * scale
    o_ref[0] = jnp.where(y > 0.0, y, 0.2 * y).astype(o_ref.dtype)


def _im2col_t(x, k=4, s=2, p=1):
    """NCHW -> [N, Cin*k*k, Ho*Wo], K ordered (Cin, kh, kw), lane dim = spatial."""
    N, C, H, W = x.shape
    Ho = (H + 2 * p - k) // s + 1
    Wo = (W + 2 * p - k) // s + 1
    xp = jnp.pad(x, ((0, 0), (0, 0), (p, p), (p, p)))
    ri = jnp.arange(Ho)[:, None] * s + jnp.arange(k)[None, :]     # [Ho, k]
    ci = jnp.arange(Wo)[:, None] * s + jnp.arange(k)[None, :]     # [Wo, k]
    # -> [N, C, Ho, kh, Wo, kw]
    patches = xp[:, :, ri[:, :, None, None], ci[None, None, :, :]]
    # -> [N, C, kh, kw, Ho, Wo] -> [N, C*k*k, Ho*Wo]
    patches = patches.transpose(0, 1, 3, 5, 2, 4).reshape(N, C * k * k, Ho * Wo)
    return patches, Ho, Wo


def _pick_hw_tile(hw, target=2048):
    """Largest tile <= target that is a multiple of 128 and divides hw."""
    if hw <= target:
        return hw
    t = (target // 128) * 128
    while t >= 128:
        if hw % t == 0:
            return t
        t -= 128
    return hw   # fallback: single tile


def unet_down(x, weight):
    """x: [N, Cin, H, W] float32.  weight: [Cout, Cin, 4, 4] float32."""
    N, Cin, H, W = x.shape
    Cout = weight.shape[0]
    K = Cin * 16

    patches, Ho, Wo = _im2col_t(x, k=4, s=2, p=1)       # [N, K, HW] f32
    HW = Ho * Wo
    t_hw = _pick_hw_tile(HW)
    num_t = HW // t_hw

    # bf16 MXU inputs; f32 accumulation happens inside the kernel.
    patches = patches.astype(jnp.bfloat16)
    w2d = weight.reshape(Cout, K).astype(jnp.bfloat16)   # [Cout, K]

    # Pass 1: conv tiles + per-(n, c) sum / sumsq over the full spatial extent.
    conv, stats = pl.pallas_call(
        _conv_stats_kernel,
        out_shape=(
            jax.ShapeDtypeStruct((N, Cout, HW), jnp.float32),
            jax.ShapeDtypeStruct((N, Cout, 2), jnp.float32),
        ),
        grid_spec=pltpu.PrefetchScalarGridSpec(
            num_scalar_prefetch=0,
            grid=(N, num_t),
            in_specs=[
                pl.BlockSpec((Cout, K), lambda n, t: (0, 0)),
                pl.BlockSpec((1, K, t_hw), lambda n, t: (n, 0, t)),
            ],
            out_specs=[
                pl.BlockSpec((1, Cout, t_hw), lambda n, t: (n, 0, t)),
                pl.BlockSpec((1, Cout, 2), lambda n, t: (n, 0, 0)),
            ],
        ),
        compiler_params=pltpu.CompilerParams(
            dimension_semantics=("parallel", "arbitrary"),
            vmem_limit_bytes=_VMEM_LIMIT_BYTES,
        ),
    )(w2d, patches)

    # Pass 2: normalize with full-HW stats + LeakyReLU; fully parallel grid.
    out = pl.pallas_call(
        functools.partial(_norm_lrelu_kernel, 1.0 / HW),
        out_shape=jax.ShapeDtypeStruct((N, Cout, HW), jnp.float32),
        grid_spec=pltpu.PrefetchScalarGridSpec(
            num_scalar_prefetch=0,
            grid=(N, num_t),
            in_specs=[
                pl.BlockSpec((1, Cout, 2), lambda n, t: (n, 0, 0)),
                pl.BlockSpec((1, Cout, t_hw), lambda n, t: (n, 0, t)),
            ],
            out_specs=pl.BlockSpec((1, Cout, t_hw), lambda n, t: (n, 0, t)),
        ),
        compiler_params=pltpu.CompilerParams(
            dimension_semantics=("parallel", "parallel"),
            vmem_limit_bytes=_VMEM_LIMIT_BYTES,
        ),
    )(stats, conv)

    # [N, Cout, HW] is already NCHW-flat: plain reshape, no transpose pass.
    return out.reshape(N, Cout, Ho, Wo)


if __name__ == "__main__":
    key = jax.random.PRNGKey(0)
    kx, kw = jax.random.split(key)

    N, Cin, H, W = 2, 4, 16, 16
    Cout = 8

    x = jax.random.normal(kx, (N, Cin, H, W), dtype=jnp.float32)
    # Deterministic synthetic conv weight, shaped like nn.Conv2d(Cin, Cout, 4).
    weight = jax.random.normal(kw, (Cout, Cin, 4, 4), dtype=jnp.float32) * 0.1

    y = unet_down(x, weight)
    jax.block_until_ready(y)
    assert y.shape == (N, Cout, H // 2, W // 2), y.shape
    print("KERNEL_OK")
</pallas_src>

<mosaic_0001>
module attributes {stable_mosaic.version = 11 : i64} {
  func.func @_conv_stats_kernel(%arg0: i32, %arg1: i32, %arg2: memref<8x64xbf16, #tpu.memory_space<vmem>>, %arg3: memref<1x64x64xbf16, #tpu.memory_space<vmem>>, %arg4: memref<1x8x64xf32, #tpu.memory_space<vmem>>, %arg5: memref<1x8x2xf32, #tpu.memory_space<vmem>>) attributes {dimension_semantics = [#tpu.dimension_semantics<parallel>, #tpu.dimension_semantics<arbitrary>], iteration_bounds = array<i64: 2, 1>, scalar_prefetch = 0 : i64, scratch_operands = 0 : i64, tpu.core_type = #tpu.core_type<tc>, window_params = [{pipeline_mode = #tpu.pipeline_mode<synchronous>, transform_indices = @transform_0, window_bounds = array<i64: 8, 64>}, {transform_indices = @transform_1, window_bounds = array<i64: 1, 64, 64>}, {transform_indices = @transform_2, window_bounds = array<i64: 1, 8, 64>}, {transform_indices = @transform_3, window_bounds = array<i64: 1, 8, 2>}]} {
    %c0 = arith.constant 0 : index
    %c0_0 = arith.constant 0 : index
    %0 = vector.load %arg2[%c0, %c0_0] : memref<8x64xbf16, #tpu.memory_space<vmem>>, vector<8x64xbf16>
    %c0_1 = arith.constant 0 : index
    %c0_2 = arith.constant 0 : index
    %c0_3 = arith.constant 0 : index
    %1 = vector.load %arg3[%c0_1, %c0_2, %c0_3] : memref<1x64x64xbf16, #tpu.memory_space<vmem>>, vector<1x64x64xbf16>
    %2 = vector.shape_cast %1 : vector<1x64x64xbf16> to vector<64x64xbf16>
    %cst = arith.constant dense<0.000000e+00> : vector<8x64xf32>
    %3 = tpu.matmul %0, %2, %cst {dimension_numbers = #tpu.dot_dimension_numbers<[1], [0], [0], [1], [0, 0, 1, 1], [], []>} : vector<8x64xbf16>, vector<64x64xbf16>, vector<8x64xf32> -> vector<8x64xf32>
    %c0_4 = arith.constant 0 : index
    %c0_5 = arith.constant 0 : index
    %c0_6 = arith.constant 0 : index
    %4 = vector.load %arg4[%c0_4, %c0_5, %c0_6] : memref<1x8x64xf32, #tpu.memory_space<vmem>>, vector<1x8x64xf32>
    %5 = vector.shape_cast %4 : vector<1x8x64xf32> to vector<8x64xf32>
    %6 = vector.shape_cast %3 : vector<8x64xf32> to vector<1x8x64xf32>
    tpu.vector_store %arg4[%c0_4, %c0_5, %c0_6], %6 {strides = array<i32>} : memref<1x8x64xf32, #tpu.memory_space<vmem>>, vector<1x8x64xf32>,
    %cst_7 = arith.constant dense<0.000000e+00> : vector<8xf32>
    %7 = vector.multi_reduction <add>, %3, %cst_7 [1] : vector<8x64xf32> to vector<8xf32>
    %8 = vector.shape_cast %7 : vector<8xf32> to vector<8x1xf32>
    %9 = arith.mulf %3, %3 : vector<8x64xf32>
    %cst_8 = arith.constant dense<0.000000e+00> : vector<8xf32>
    %10 = vector.multi_reduction <add>, %9, %cst_8 [1] : vector<8x64xf32> to vector<8xf32>
    %11 = vector.shape_cast %10 : vector<8xf32> to vector<8x1xf32>
    %12 = tpu.concatenate %8, %11 in 1 : vector<8x1xf32>, vector<8x1xf32> -> vector<8x2xf32>
    %c0_i32 = arith.constant 0 : i32
    %13 = arith.cmpi eq, %arg1, %c0_i32 : i32
    %14 = arith.extui %13 : i1 to i32
    %c0_i32_9 = arith.constant 0 : i32
    %15 = arith.cmpi ne, %14, %c0_i32_9 : i32
    scf.if %15 {
      %c0_12 = arith.constant 0 : index
      %c0_13 = arith.constant 0 : index
      %c0_14 = arith.constant 0 : index
      %19 = vector.load %arg5[%c0_12, %c0_13, %c0_14] : memref<1x8x2xf32, #tpu.memory_space<vmem>>, vector<1x8x2xf32>
      %20 = vector.shape_cast %19 : vector<1x8x2xf32> to vector<8x2xf32>
      %21 = vector.shape_cast %12 : vector<8x2xf32> to vector<1x8x2xf32>
      tpu.vector_store %arg5[%c0_12, %c0_13, %c0_14], %21 {strides = array<i32>} : memref<1x8x2xf32, #tpu.memory_space<vmem>>, vector<1x8x2xf32>,
    } else {
    }
    %c0_i32_10 = arith.constant 0 : i32
    %16 = arith.cmpi ne, %arg1, %c0_i32_10 : i32
    %17 = arith.extui %16 : i1 to i32
    %c0_i32_11 = arith.constant 0 : i32
    %18 = arith.cmpi ne, %17, %c0_i32_11 : i32
    scf.if %18 {
      %c0_12 = arith.constant 0 : index
      %c0_13 = arith.constant 0 : index
      %c0_14 = arith.constant 0 : index
      %19 = vector.load %arg5[%c0_12, %c0_13, %c0_14] : memref<1x8x2xf32, #tpu.memory_space<vmem>>, vector<1x8x2xf32>
      %20 = vector.shape_cast %19 : vector<1x8x2xf32> to vector<8x2xf32>
      %21 = arith.addf %20, %12 : vector<8x2xf32>
      %c0_15 = arith.constant 0 : index
      %c0_16 = arith.constant 0 : index
      %c0_17 = arith.constant 0 : index
      %22 = vector.load %arg5[%c0_15, %c0_16, %c0_17] : memref<1x8x2xf32, #tpu.memory_space<vmem>>, vector<1x8x2xf32>
      %23 = vector.shape_cast %22 : vector<1x8x2xf32> to vector<8x2xf32>
      %24 = vector.shape_cast %21 : vector<8x2xf32> to vector<1x8x2xf32>
      tpu.vector_store %arg5[%c0_15, %c0_16, %c0_17], %24 {strides = array<i32>} : memref<1x8x2xf32, #tpu.memory_space<vmem>>, vector<1x8x2xf32>,
    } else {
    }
    return
  }
  func.func @transform_0(%arg0: i32, %arg1: i32) -> (i32, i32) {
    %c0_i32 = arith.constant 0 : i32
    %c0_i32_0 = arith.constant 0 : i32
    %c0_i32_1 = arith.constant 0 : i32
    return %c0_i32, %c0_i32_0 : i32, i32
  }
  func.func @transform_1(%arg0: i32, %arg1: i32) -> (i32, i32, i32) {
    %c0_i32 = arith.constant 0 : i32
    %c0_i32_0 = arith.constant 0 : i32
    return %arg0, %c0_i32, %arg1 : i32, i32, i32
  }
  func.func @transform_2(%arg0: i32, %arg1: i32) -> (i32, i32, i32) {
    %c0_i32 = arith.constant 0 : i32
    %c0_i32_0 = arith.constant 0 : i32
    return %arg0, %c0_i32, %arg1 : i32, i32, i32
  }
  func.func @transform_3(%arg0: i32, %arg1: i32) -> (i32, i32, i32) {
    %c0_i32 = arith.constant 0 : i32
    %c0_i32_0 = arith.constant 0 : i32
    %c0_i32_1 = arith.constant 0 : i32
    return %arg0, %c0_i32, %c0_i32_0 : i32, i32, i32
  }
}

</mosaic_0001>

<llo_original>
// kernel: tpu_custom_call.1
$region0: #{tpu_custom_call.1}
  #allocation0 [shape = 'u32[]', space=smem, size = 0x4, offset = 0x4, fixed_abs, tag = 'smem constant byte address 0x4 - core index']
  #allocation1 [shape = 'u32[72,128]{1,0:T(1,128)}', space=vmem, size = 0x9000, scoped, tag = 'internal scratch']
  %s0 = inlined_call_operand.hbm [shape: bf16[8,64], index: 0, kind: input, shape index: {}]
  %s1 = inlined_call_operand.hbm [shape: bf16[2,64,64], index: 1, kind: input, shape index: {}]
  %s2 = inlined_call_operand.hbm [shape: f32[2,8,64], index: 2, kind: output, shape index: {0}]
  %s3 = inlined_call_operand.vmem [shape: f32[2,8,2], index: 3, kind: output, shape index: {1}]
  %4 = xla_tuple %s2, %s3
  %s5 = sld [smem:[#allocation0]]
  $region65: #{tpu_custom_call.1} parent=0
    _
  %s7 = ssub.s32 1, %s5
  %s8 = scalar_select 0, %s7, %s5
  $region1: #{tpu_custom_call.1} parent=0
    #allocation2 [shape = 'u8[2048]{0}', space=vmem, size = 0x800, scoped, tag = 'input window, operand 0, single buffered']
    #allocation3 [shape = 's32[2]{0}', space=sflag, size = 0x8, scoped, tag = 'scoped memory for tpu_custom_call.1']
    #allocation4 [shape = 's32[2]{0}', space=sflag, size = 0x8, scoped, tag = 'scoped memory for tpu_custom_call.1']
    #allocation5 [shape = 'u8[32768]{0}', space=vmem, size = 0x8000, scoped, tag = 'input window, operand 1']
    #allocation6 [shape = 's32[2]{0}', space=sflag, size = 0x8, scoped, tag = 'scoped memory for tpu_custom_call.1']
    #allocation7 [shape = 'u8[8192]{0}', space=vmem, size = 0x2000, scoped, tag = 'output window, operand 0']
    %9 = vsyncpa [#allocation3], 0
    %10 = vsyncpa [#allocation6], 0
    %s11 = scalar_lea.sflag [#allocation6], 1
    %12 = vsyncpa %s11, 0
    %13 = vsyncpa [#allocation4], 0
    %s14 = scalar_lea.sflag [#allocation4], 1
    %15 = vsyncpa %s14, 0
    loop: start=0, step=1, limit=4
    $region2: #{tpu_custom_call.1} parent=1 // loop_pre_header
      _
    $region3: #{tpu_custom_call.1} parent=1 // loop_header
      %s17 = sphi 0, %s21
      %p18 = scmp.ge.s32.totalorder %s17, 4
      %s24 = sphi 0, %s36
      %s25 = sphi 0, %s32
      %s26 = sphi 0, %s24
      %s27 = sphi 0, %s25
      %s28 = sphi 0, %s26
      %s29 = sphi 0, %s27
      %s37 = sphi 0, %s37
      %s39 = sphi 0, %s37
      %s40 = sphi 0, %s39
      %s54 = sphi 0, %s40
      %s62 = sphi 0, %s64
      %s65 = sphi 0, %s62
      %s66 = sphi 0, %s65
      %s82 = sphi 0, %s66
      %s90 = sphi 0, %s92
      %s93 = sphi 0, %s90
      %s94 = sphi 0, %s93
      %s110 = sphi 0, %s94
      %s116 = sphi 0, %s118
      %s119 = sphi 0, %s116
      %s120 = sphi 0, %s119
      %s136 = sphi 0, %s120
    $region4: #{tpu_custom_call.1} parent=1 // loop_header_branch
      %20 = sbr.rel (%p18) target = $region8
    $region5: #{tpu_custom_call.1} parent=1 // loop_body
      %s22 = ssub.s32 %s17, 1
      %s23 = ssub.s32 %s17, 2
      %s30 = sadd.s32 1, %s25
      %p31 = scmp.ge.s32.totalorder %s30, 1
      %s32 = scalar_select %p31, 0, %s30
      %s33 = sadd.s32 1, %s24
      %s34 = scalar_select %p31, %s33, %s24
      %p35 = scmp.ge.s32.totalorder %s34, 2
      %s36 = scalar_select %p35, 0, %s34
      %s38 = sadd.s32 %s37, 1
      %p41 = scmp.eq.s32.totalorder %s17, 1
      %p42 = scmp.ne.s32.totalorder %s37, %s39
      %p43 = scmp.eq.s32.totalorder %s17, 0
      %p44 = por %p42, %p43
      %p45 = scmp.ne.s32.totalorder %s37, %s39
      %p46 = scmp.eq.s32.totalorder %s22, 1
      %p47 = por %p45, %p46
      %p48 = scmp.ne.s32.totalorder %s39, %s40
      %p49 = scmp.eq.s32.totalorder %s22, 0
      %p50 = por %p48, %p49
      %p51 = scmp.ne.s32.totalorder %s39, %s40
      %p52 = scmp.eq.s32.totalorder %s23, 1
      %p53 = por %p51, %p52
      %p55 = scmp.ne.s32.totalorder %s40, %s54
      %p56 = scmp.eq.s32.totalorder %s23, 0
      %p57 = por %p55, %p56
      %s58 = ssub.s32 %s24, %s36
      %s59 = ssub.s32 %s25, %s32
      %s60 = sor.u32 %s58, %s59
      %p61 = scmp.eq.s32.totalorder %s60, 0
      %s63 = sadd.s32 %s62, 1
      %s64 = scalar_select %p61, %s62, %s63
      %p67 = pneg %p61
      %p68 = scmp.eq.s32.totalorder %s17, 1
      %p69 = por %p67, %p68
      %p70 = scmp.ne.s32.totalorder %s62, %s65
      %p71 = scmp.eq.s32.totalorder %s17, 0
      %p72 = por %p70, %p71
      %p73 = scmp.ne.s32.totalorder %s62, %s65
      %p74 = scmp.eq.s32.totalorder %s22, 1
      %p75 = por %p73, %p74
      %p76 = scmp.ne.s32.totalorder %s65, %s66
      %p77 = scmp.eq.s32.totalorder %s22, 0
      %p78 = por %p76, %p77
      %p79 = scmp.ne.s32.totalorder %s65, %s66
      %p80 = scmp.eq.s32.totalorder %s23, 1
      %p81 = por %p79, %p80
      %p83 = scmp.ne.s32.totalorder %s66, %s82
      %p84 = scmp.eq.s32.totalorder %s23, 0
      %p85 = por %p83, %p84
      %s86 = ssub.s32 %s24, %s36
      %s87 = ssub.s32 %s25, %s32
      %s88 = sor.u32 %s86, %s87
      %p89 = scmp.eq.s32.totalorder %s88, 0
      %s91 = sadd.s32 %s90, 1
      %s92 = scalar_select %p89, %s90, %s91
      %p95 = pneg %p89
      %p96 = scmp.eq.s32.totalorder %s17, 1
      %p97 = por %p95, %p96
      %p98 = scmp.ne.s32.totalorder %s90, %s93
      %p99 = scmp.eq.s32.totalorder %s17, 0
      %p100 = por %p98, %p99
      %p101 = scmp.ne.s32.totalorder %s90, %s93
      %p102 = scmp.eq.s32.totalorder %s22, 1
      %p103 = por %p101, %p102
      %p104 = scmp.ne.s32.totalorder %s93, %s94
      %p105 = scmp.eq.s32.totalorder %s22, 0
      %p106 = por %p104, %p105
      %p107 = scmp.ne.s32.totalorder %s93, %s94
      %p108 = scmp.eq.s32.totalorder %s23, 1
      %p109 = por %p107, %p108
      %p111 = scmp.ne.s32.totalorder %s94, %s110
      %p112 = scmp.eq.s32.totalorder %s23, 0
      %p113 = por %p111, %p112
      %s114 = ssub.s32 %s24, %s36
      %p115 = scmp.eq.s32.totalorder %s114, 0
      %s117 = sadd.s32 %s116, 1
      %s118 = scalar_select %p115, %s116, %s117
      %p121 = pneg %p115
      %p122 = scmp.eq.s32.totalorder %s17, 1
      %p123 = por %p121, %p122
      %p124 = scmp.ne.s32.totalorder %s116, %s119
      %p125 = scmp.eq.s32.totalorder %s17, 0
      %p126 = por %p124, %p125
      %p127 = scmp.ne.s32.totalorder %s116, %s119
      %p128 = scmp.eq.s32.totalorder %s22, 1
      %p129 = por %p127, %p128
      %p130 = scmp.ne.s32.totalorder %s119, %s120
      %p131 = scmp.eq.s32.totalorder %s22, 0
      %p132 = por %p130, %p131
      %p133 = scmp.ne.s32.totalorder %s119, %s120
      %p134 = scmp.eq.s32.totalorder %s23, 1
      %p135 = por %p133, %p134
      %p137 = scmp.ne.s32.totalorder %s120, %s136
      %p138 = scmp.eq.s32.totalorder %s23, 0
      %p139 = por %p137, %p138
      %p140 = scmp.le.s32.totalorder 1, %s17
      %p141 = scmp.lt.s32.totalorder %s17, 3
      %p142 = pnand %p140, %p141
      %p143 = pneg %p142
      // Predicated region
      $region9: #{tpu_custom_call.1} parent=5 // pred_check
        _
      $region10: #{tpu_custom_call.1} parent=5 // pred_check_branch
        %145 = sbr.rel (%p142) target = $region12
      $region11: #{tpu_custom_call.1} parent=5 // pred_region
        %s146 = ssub.s32 %s17, 1
        // Predicated region
        $region13: #{tpu_custom_call.1} parent=11 // pred_check
          %p147 = pneg %p50
        $region14: #{tpu_custom_call.1} parent=11 // pred_check_branch
          %149 = sbr.rel (%p147) target = $region16
        $region15: #{tpu_custom_call.1} parent=11 // pred_region
          %151 = vsyncadd [#allocation3], 0
          %s153 = sshll.u32 %s0, 4
          %s154 = int_to_ptr.hbm [resolvable:$true] %s153
          %s155 = sshll.u32 [#allocation2], 4
          %s156 = int_to_ptr.vmem [resolvable:$true] %s155
          %158 = dma.hbm_to_vmem [thread:$0]  %s154, 64, %s156, [#allocation3]
        $region16: #{tpu_custom_call.1} parent=11 // pred_fallthru
          _
      $region12: #{tpu_custom_call.1} parent=5 // pred_fallthru
        _
      %p159 = scmp.lt.s32.totalorder %s17, 2
      // Predicated region
      $region17: #{tpu_custom_call.1} parent=5 // pred_check
        %p160 = pneg %p159
      $region18: #{tpu_custom_call.1} parent=5 // pred_check_branch
        %162 = sbr.rel (%p160) target = $region20
      $region19: #{tpu_custom_call.1} parent=5 // pred_region
        // Predicated region
        $region21: #{tpu_custom_call.1} parent=19 // pred_check
          %p163 = pneg %p72
        $region22: #{tpu_custom_call.1} parent=19 // pred_check_branch
          %165 = sbr.rel (%p163) target = $region24
        $region23: #{tpu_custom_call.1} parent=19 // pred_region
          %s166 = sand.u32 %s62, 1
          %s167 = scalar_lea.sflag [#allocation6], %s166
          %s168 = sand.u32 %s62, 1
          %s169 = smul.addr %s168, 32
          %s170 = scalar_lea.vmem [#allocation5], %s169
          %172 = vsyncadd %s167, 0
          %s173 = smul.addr %s24, 8
          %s174 = sadd.s32 %s25, %s173
          %s175 = smul.addr %s174, 4
          %s176 = scalar_lea.hbm %s1, %s175
          %s177 = sshll.u32 %s176, 4
          %s178 = int_to_ptr.hbm [resolvable:$true] %s177
          %s179 = sshll.u32 %s170, 4
          %s180 = int_to_ptr.vmem [resolvable:$true] %s179
          %185 = dma.hbm_to_vmem [thread:$0]  %s178, 512, %s180, %s167, 64, 64, 4
        $region24: #{tpu_custom_call.1} parent=19 // pred_fallthru
          _
      $region20: #{tpu_custom_call.1} parent=5 // pred_fallthru
        _
      %p186 = scmp.le.s32.totalorder 1, %s17
      %p187 = scmp.lt.s32.totalorder %s17, 3
      %p188 = pnand %p186, %p187
      %p189 = pneg %p188
      // Predicated region
      $region25: #{tpu_custom_call.1} parent=5 // pred_check
        _
      $region26: #{tpu_custom_call.1} parent=5 // pred_check_branch
        %191 = sbr.rel (%p188) target = $region28
      $region27: #{tpu_custom_call.1} parent=5 // pred_region
        %s192 = ssub.s32 %s17, 1
        // Predicated region
        $region29: #{tpu_custom_call.1} parent=27 // pred_check
          %p193 = pneg %p50
        $region30: #{tpu_custom_call.1} parent=27 // pred_check_branch
          %195 = sbr.rel (%p193) target = $region32
        $region31: #{tpu_custom_call.1} parent=27 // pred_region
          %197 = dma.done [#allocation3], 64
        $region32: #{tpu_custom_call.1} parent=27 // pred_fallthru
          _
        %s198 = sand.u32 %s65, 1
        %s199 = scalar_lea.sflag [#allocation6], %s198
        %s200 = sand.u32 %s65, 1
        %s201 = smul.addr %s200, 32
        %s202 = scalar_lea.vmem [#allocation5], %s201
        // Predicated region
        $region33: #{tpu_custom_call.1} parent=27 // pred_check
          %p203 = pneg %p78
        $region34: #{tpu_custom_call.1} parent=27 // pred_check_branch
          %205 = sbr.rel (%p203) target = $region36
        $region35: #{tpu_custom_call.1} parent=27 // pred_region
          %207 = dma.done %s199, 512
        $region36: #{tpu_custom_call.1} parent=27 // pred_fallthru
          _
        %p208 = pneg %p50
        %p209 = pneg %p47
        %s210 = sand.u32 %s65, 1
        %s211 = scalar_lea.sflag [#allocation6], %s210
        %s212 = sand.u32 %s65, 1
        %s213 = smul.addr %s212, 32
        %s214 = scalar_lea.vmem [#allocation5], %s213
        %p215 = pneg %p78
        %p216 = pneg %p75
        %p217 = pneg %p106
        %p218 = pneg %p103
        %s219 = sand.u32 %s93, 1
        %s220 = scalar_lea.sflag [#allocation4], %s219
        %s221 = sand.u32 %s93, 1
        %s222 = smul.addr %s221, 8
        %s223 = scalar_lea.vmem [#allocation7], %s222
        %p224 = pneg %p132
        %p225 = pneg %p129
        %p226 = scmp.lt.s32.totalorder %s26, 1
        %s227 = scalar_select %p226, %s26, 1
        %s228 = smul.addr %s227, 8
        %s229 = scalar_lea.vmem %s3, %s228
        %p230 = scmp.lt.s32.totalorder %s26, 1
        %s231 = scalar_select %p230, %s26, 1
        %s232 = smul.addr %s231, 8
        %s233 = scalar_lea.vmem %s3, %s232
        %v235 = vld [vmem:[#allocation2] sm:$0xf]
        %v236 = vld [vmem:[%s202] sm:$0xf]
        %v237 = vld [vmem:[%s202 + $0x4] sm:$0xf]
        %v238 = vld [vmem:[%s202 + $0x8] sm:$0xf]
        %v239 = vld [vmem:[%s202 + $0xc] sm:$0xf]
        %v240 = vld [vmem:[%s202 + $0x10] sm:$0xf]
        %v241 = vld [vmem:[%s202 + $0x14] sm:$0xf]
        %v242 = vld [vmem:[%s202 + $0x18] sm:$0xf]
        %v243 = vld [vmem:[%s202 + $0x1c] sm:$0xf]
        %v252 = vunpack.c.l.b16 %v236
        %v253 = vunpack.c.l.b16 %v237
        %v254 = vunpack.c.l.b16 %v238
        %v255 = vunpack.c.l.b16 %v239
        %v256 = vunpack.c.l.b16 %v240
        %v257 = vunpack.c.l.b16 %v241
        %v258 = vunpack.c.l.b16 %v242
        %v259 = vunpack.c.l.b16 %v243
        %v260 = vpack.c.b16 %v253, %v252
        %v261 = vpack.c.b16 %v255, %v254
        %v262 = vpack.c.b16 %v257, %v256
        %v263 = vpack.c.b16 %v259, %v258
        %vm268 = vcmask 523264
        %v270 = vsel %vm268, %v235, 0
        %272 = vmatpush.bf16.msra.mxu0 0
        %273 = vmatpush.bf16.msra.mxu0 0
        %274 = vmatpush.bf16.msra.mxu0 0
        %275 = vmatpush.bf16.msra.mxu0 0
        %276 = vmatpush.bf16.msra.mxu0 %v263
        %277 = vmatpush.bf16.msra.mxu0 %v262
        %278 = vmatpush.bf16.msra.mxu0 %v261
        %279 = vmatpush.bf16.msra.mxu0 %v260
        %280 = vmatmul.bf16.gmra.mxu0 %v270
        %v281 = vpop.f32.mrf.mxu0
        %v282 = vadd.f32 0.0, %v281
        %v283 = vpop.f32.mrf.mxu0
        %284 = vdwg.mxu0
        %285 = vst.msk [vmem:[%s223] sm:$0xff] %vm268, %v282
        %v286 = vsel %vm268, %v282, 0.0
        %287 = vadd.xlane.f32.xlu0 %v286
        %v288 = vpop.xlane.xlu0 %287
        %v289 = vmul.f32 %v282, %v282
        %v290 = vsel %vm268, %v289, 0.0
        %291 = vadd.xlane.f32.xlu0 %v290
        %v292 = vpop.xlane.xlu0 %291
        %vm293 = vcmask 7168
        %v294 = vsel %vm293, %v288, %v292
        %p295 = scmp.eq.s32.totalorder %s27, 0
        // Predicated region
        $region37: #{tpu_custom_call.1} parent=27 // pred_check
          %p296 = pneg %p295
        $region38: #{tpu_custom_call.1} parent=27 // pred_check_branch
          %298 = sbr.rel (%p296) target = $region40
        $region39: #{tpu_custom_call.1} parent=27 // pred_region
          %vm299 = vcmask 15360
          %300 = vst.msk [vmem:[%s233] sm:$0xff] %vm299, %v294
        $region40: #{tpu_custom_call.1} parent=27 // pred_fallthru
          _
        %p301 = scmp.ne.s32.totalorder %s27, 0
        // Predicated region
        $region41: #{tpu_custom_call.1} parent=27 // pred_check
          %p302 = pneg %p301
        $region42: #{tpu_custom_call.1} parent=27 // pred_check_branch
          %304 = sbr.rel (%p302) target = $region44
        $region43: #{tpu_custom_call.1} parent=27 // pred_region
          %v305 = vld [vmem:[%s233] sm:$0xff]
          %v306 = vadd.f32 %v305, %v294
          %vm307 = vcmask 15360
          %308 = vst.msk [vmem:[%s233] sm:$0xff] %vm307, %v306
        $region44: #{tpu_custom_call.1} parent=27 // pred_fallthru
          _
        %s309 = sand.u32 %s93, 1
        %s310 = scalar_lea.sflag [#allocation4], %s309
        %s311 = sand.u32 %s93, 1
        %s312 = smul.addr %s311, 8
        %s313 = scalar_lea.vmem [#allocation7], %s312
        %p314 = scmp.lt.s32.totalorder %s26, 1
        %s315 = scalar_select %p314, %s26, 1
        %s316 = smul.addr %s315, 8
        %s317 = scalar_lea.vmem %s3, %s316
        // Predicated region
        $region45: #{tpu_custom_call.1} parent=27 // pred_check
          %p318 = pneg %p103
        $region46: #{tpu_custom_call.1} parent=27 // pred_check_branch
          %320 = sbr.rel (%p318) target = $region48
        $region47: #{tpu_custom_call.1} parent=27 // pred_region
          %322 = vsyncadd %s310, 0
          %s323 = sadd.s32 %s27, %s26
          %s324 = smul.addr %s323, 8
          %s325 = scalar_lea.hbm %s2, %s324
          %s327 = sshll.u32 %s313, 4
          %s328 = int_to_ptr.vmem [resolvable:$true] %s327
          %s329 = sshll.u32 %s325, 4
          %s330 = int_to_ptr.hbm [resolvable:$true] %s329
          %332 = dma.vmem_to_hbm [thread:$0]  %s328, 128, %s330, %s310
        $region48: #{tpu_custom_call.1} parent=27 // pred_fallthru
          _
        // Predicated region
        $region49: #{tpu_custom_call.1} parent=27 // pred_check
          %p333 = pneg %p129
        $region50: #{tpu_custom_call.1} parent=27 // pred_check_branch
          %335 = sbr.rel (%p333) target = $region52
        $region51: #{tpu_custom_call.1} parent=27 // pred_region
          _
        $region52: #{tpu_custom_call.1} parent=27 // pred_fallthru
          _
      $region28: #{tpu_custom_call.1} parent=5 // pred_fallthru
        _
      %p336 = scmp.le.s32.totalorder 2, %s17
      // Predicated region
      $region53: #{tpu_custom_call.1} parent=5 // pred_check
        %p337 = pneg %p336
      $region54: #{tpu_custom_call.1} parent=5 // pred_check_branch
        %339 = sbr.rel (%p337) target = $region56
      $region55: #{tpu_custom_call.1} parent=5 // pred_region
        %s340 = ssub.s32 %s17, 2
        // Predicated region
        $region57: #{tpu_custom_call.1} parent=55 // pred_check
          %p341 = pneg %p109
        $region58: #{tpu_custom_call.1} parent=55 // pred_check_branch
          %343 = sbr.rel (%p341) target = $region60
        $region59: #{tpu_custom_call.1} parent=55 // pred_region
          %s344 = sand.u32 %s94, 1
          %s345 = scalar_lea.sflag [#allocation4], %s344
          %s346 = sand.u32 %s94, 1
          %s347 = smul.addr %s346, 8
          %s348 = scalar_lea.vmem [#allocation7], %s347
          %350 = dma.done %s345, 128
        $region60: #{tpu_custom_call.1} parent=55 // pred_fallthru
          _
        // Predicated region
        $region61: #{tpu_custom_call.1} parent=55 // pred_check
          %p351 = pneg %p135
        $region62: #{tpu_custom_call.1} parent=55 // pred_check_branch
          %353 = sbr.rel (%p351) target = $region64
        $region63: #{tpu_custom_call.1} parent=55 // pred_region
          %p354 = scmp.lt.s32.totalorder %s28, 1
          %s355 = scalar_select %p354, %s28, 1
          %s356 = smul.addr %s355, 8
          %s357 = scalar_lea.vmem %s3, %s356
        $region64: #{tpu_custom_call.1} parent=55 // pred_fallthru
          _
      $region56: #{tpu_custom_call.1} parent=5 // pred_fallthru
        _
    $region6: #{tpu_custom_call.1} parent=1 // loop_footer
      %s21 = sadd.s32 1, %s17
    $region7: #{tpu_custom_call.1} parent=1 // loop_footer_branch
      %16 = sbr.rel target = $region3
    $region8: #{tpu_custom_call.1} parent=1 // loop_exit
      _
    %358 = vsyncpa [#allocation3], 1
    %s359 = scalar_lea.sflag [#allocation3], 1
    %360 = vsyncpa %s359, 1
    %361 = vsyncpa [#allocation6], 1
    %s362 = scalar_lea.sflag [#allocation6], 1
    %363 = vsyncpa %s362, 1
    %364 = vsyncpa [#allocation4], 1
    %s365 = scalar_lea.sflag [#allocation4], 1
    %366 = vsyncpa %s365, 1

</llo_original>
